<compile_context>
chip_gen: v5e
topology: v5e:2x2
jax: 0.10.0
libtpu: 0.0.40
codegen_flags: <defaults>
</compile_context>

<pallas_src>
import functools

import jax
import jax.numpy as jnp
from jax import lax
from jax.experimental import pallas as pl
from jax.experimental.pallas import tpu as pltpu

_EPS = 1e-12          # F.normalize default eps
_LANE = 128
_SUBLANE = 8


def _round_up(a, b):
    return (a + b - 1) // b * b


# --------------------------------------------------------------------------
# Fused kernel: step 0 computes K (normalized) and V for all rows into VMEM
# scratch; every step computes Q for its tile, attention, and the residual add.
# --------------------------------------------------------------------------
def _fused_attention_kernel(x_ref, wq_ref, bq_ref, wkv_ref, bkv_ref,   # inputs
                            o_ref,                                      # output
                            kn_sc, v_sc,                                # scratch
                            *, dp, tile_rows, n_valid, activation):
    qi = pl.program_id(0)
    eps2 = jnp.float32(_EPS * _EPS)

    # ---- step 0: project + L2-normalize K, project V, park in bf16 VMEM scratch.
    @pl.when(qi == 0)
    def _():
        xf = x_ref[...].astype(jnp.bfloat16)                         # (Np, Dp)
        kv = jnp.dot(xf, wkv_ref[...],
                     preferred_element_type=jnp.float32) + bkv_ref[...]
        k = kv[:, :dp]
        v = kv[:, dp:]
        # F.normalize: x / max(||x||, eps) == x * rsqrt(max(||x||^2, eps^2)).
        k = k * lax.rsqrt(jnp.maximum(jnp.sum(k * k, axis=-1, keepdims=True), eps2))
        # Zero padded key rows -> their scores are exactly 0 (relu/leaky need no
        # explicit column mask later).
        rows = lax.broadcasted_iota(jnp.int32, k.shape, 0)
        k = jnp.where(rows < n_valid, k, 0.0)
        kn_sc[...] = k.astype(jnp.bfloat16)
        v_sc[...] = v.astype(jnp.bfloat16)

    # ---- every step: Q projection for this query tile + attention + residual.
    row0 = pl.multiple_of(qi * tile_rows, tile_rows)
    x_t = x_ref[pl.ds(row0, tile_rows), :]                           # (TQ, Dp) f32
    q = jnp.dot(x_t.astype(jnp.bfloat16), wq_ref[...],
                preferred_element_type=jnp.float32) + bq_ref[...]
    q = q * lax.rsqrt(jnp.maximum(jnp.sum(q * q, axis=-1, keepdims=True), eps2))

    # cosine similarity q @ k^T without materializing the transpose (MXU bf16).
    s = lax.dot_general(q.astype(jnp.bfloat16), kn_sc[...],
                        (((1,), (1,)), ((), ())),
                        preferred_element_type=jnp.float32)          # (TQ, Np)

    if activation == "relu":
        attn = jnp.maximum(s, 0.0)
    elif activation == "sigmoid":
        attn = jax.nn.sigmoid(s)
    elif activation == "leakyrelu":
        attn = jnp.where(s >= 0.0, s, 0.1 * s)
    else:
        raise ValueError(activation)

    # Zero the (global) diagonal; only the sigmoid path also needs to mask the
    # padded key columns (sigmoid(0) = 0.5, relu/leaky of 0 are already 0).
    rows = lax.broadcasted_iota(jnp.int32, attn.shape, 0) + row0
    cols = lax.broadcasted_iota(jnp.int32, attn.shape, 1)
    mask = cols == rows
    if activation == "sigmoid":
        mask = mask | (cols >= n_valid)
    attn = jnp.where(mask, 0.0, attn)

    # Row-sum normalization with the reciprocal on the EUP.
    denom = jnp.sum(attn, axis=-1, keepdims=True)
    inv = pl.reciprocal(jnp.maximum(denom, jnp.float32(_EPS)), approx=True)
    attn = attn * inv

    out = jnp.dot(attn.astype(jnp.bfloat16), v_sc[...],
                  preferred_element_type=jnp.float32) + x_t
    o_ref[...] = out.astype(o_ref.dtype)


# --------------------------------------------------------------------------
# One-time weight preparation (hoisted out of the per-call path).
# --------------------------------------------------------------------------
def prepare_params(params, input_size):
    """Pad the feature axis to a lane multiple, pack K/V weights, cast to bf16."""
    d = input_size
    dp = _round_up(d, _LANE)

    def pad_w(w):   # [D, D] (stored as W^T) -> [Dp, Dp]
        return jnp.pad(w, ((0, dp - d), (0, dp - d)))

    def pad_b(b):   # [1, D] -> [1, Dp]
        return jnp.pad(b, ((0, 0), (0, dp - d)))

    return dict(
        wq=pad_w(params["wq"]).astype(jnp.bfloat16),
        bq=pad_b(params["bq"]).astype(jnp.float32),
        wkv=jnp.concatenate([pad_w(params["wk"]), pad_w(params["wv"])],
                            axis=1).astype(jnp.bfloat16),             # [Dp, 2*Dp]
        bkv=jnp.concatenate([pad_b(params["bk"]), pad_b(params["bv"])],
                            axis=1).astype(jnp.float32),              # [1, 2*Dp]
    )


# --------------------------------------------------------------------------
# Wrapper
# --------------------------------------------------------------------------
@functools.partial(jax.jit, static_argnames=("activation", "block_rows"))
def attention_block(x, wq, bq, wkv, bkv, activation="relu", block_rows=128):
    """x: [N, D] float32.  wq/bq/wkv/bkv: padded + packed via prepare_params()."""
    n, d = x.shape
    dp = wq.shape[0]                                                   # padded feature axis
    tr = _round_up(max(_SUBLANE, min(block_rows, _round_up(n, _SUBLANE))), _SUBLANE)
    np_rows = _round_up(n, tr)
    n_tiles = np_rows // tr

    # Zero-pad rows/features (padded key rows are zeroed again post-projection
    # inside the kernel; padded query rows are sliced off at the end).
    x_pad = jnp.pad(x, ((0, np_rows - n), (0, dp - d)))

    # Explicit VMEM budget from the actual buffer sizes (never below the 32 MiB
    # scoped default, capped well under the smallest physical VMEM).
    resident = (np_rows * dp * 4            # x (f32, resident)
                + wq.size * 2 + wkv.size * 2
                + bq.size * 4 + bkv.size * 4)
    scratch = 2 * np_rows * dp * 2          # kn + v scratch (bf16)
    io_tiles = 2 * tr * dp * 4              # double-buffered output tile
    strip = 3 * tr * np_rows * 4            # attn strip + iota/mask temporaries
    vmem_limit = int(min(max(2 * resident + scratch + io_tiles + strip + (8 << 20),
                             32 << 20), 96 << 20))

    flops = int(4 * np_rows * dp * dp       # K/V projection
                + 2 * np_rows * dp * dp     # Q projection (all tiles)
                + 4 * np_rows * np_rows * dp)  # scores + attn @ v
    transcendentals = int(np_rows * (np_rows if activation == "sigmoid" else 2))
    bytes_accessed = int(2 * np_rows * dp * 4
                         + wq.size * 2 + wkv.size * 2 + bq.size * 4 + bkv.size * 4)

    out_pad = pl.pallas_call(
        functools.partial(_fused_attention_kernel, dp=dp, tile_rows=tr,
                          n_valid=n, activation=activation),
        grid=(n_tiles,),
        in_specs=[
            pl.BlockSpec((np_rows, dp), lambda i: (0, 0)),   # x (resident: K/V source, Q tiles, residual)
            pl.BlockSpec((dp, dp), lambda i: (0, 0)),        # Wq  (bf16, resident)
            pl.BlockSpec((1, dp), lambda i: (0, 0)),         # bq
            pl.BlockSpec((dp, 2 * dp), lambda i: (0, 0)),    # Wkv (bf16, resident)
            pl.BlockSpec((1, 2 * dp), lambda i: (0, 0)),     # bkv
        ],
        out_specs=pl.BlockSpec((tr, dp), lambda i: (i, 0)),
        out_shape=jax.ShapeDtypeStruct((np_rows, dp), x.dtype),
        scratch_shapes=[
            pltpu.VMEM((np_rows, dp), jnp.bfloat16),         # normalized K (padded rows zeroed)
            pltpu.VMEM((np_rows, dp), jnp.bfloat16),         # V
        ],
        cost_estimate=pl.CostEstimate(flops=flops,
                                      transcendentals=transcendentals,
                                      bytes_accessed=bytes_accessed),
        compiler_params=pltpu.CompilerParams(
            # Step-0 K/V scratch is reused by all later steps -> keep the grid
            # axis sequential on one core.
            dimension_semantics=("arbitrary",),
            vmem_limit_bytes=vmem_limit,
        ),
    )(x_pad, wq, bq, wkv, bkv)

    return out_pad[:n, :d]


# --------------------------------------------------------------------------
# Helpers / reference / test
# --------------------------------------------------------------------------
def _init_linear(key, d_in, d_out):
    """PyTorch nn.Linear default init: U(-1/sqrt(d_in), 1/sqrt(d_in))."""
    kw, kb = jax.random.split(key)
    bound = 1.0 / jnp.sqrt(jnp.float32(d_in))
    w = jax.random.uniform(kw, (d_in, d_out), jnp.float32, -bound, bound)  # stored as W^T
    b = jax.random.uniform(kb, (1, d_out), jnp.float32, -bound, bound)
    return w, b


def _reference(x, params, activation="relu"):
    """Pure-JAX f32 reference of the same forward pass."""
    eps = 1e-12
    q = x @ params["wq"] + params["bq"]
    k = x @ params["wk"] + params["bk"]
    v = x @ params["wv"] + params["bv"]
    q = q / jnp.maximum(jnp.linalg.norm(q, axis=-1, keepdims=True), eps)
    k = k / jnp.maximum(jnp.linalg.norm(k, axis=-1, keepdims=True), eps)
    cos = q @ k.T
    if activation == "relu":
        a = jnp.maximum(cos, 0.0)
    elif activation == "sigmoid":
        a = jax.nn.sigmoid(cos)
    else:
        a = jnp.where(cos >= 0.0, cos, 0.1 * cos)
    a = a * (1.0 - jnp.eye(a.shape[0], dtype=a.dtype))
    a = a / jnp.maximum(jnp.sum(a, axis=-1, keepdims=True), eps)
    return a @ v + x


if __name__ == "__main__":
    N, D = 96, 32         # input_size == output_size == 32 (required by the "+ x" residual)
    key = jax.random.PRNGKey(0)
    kx, kq, kk, kv = jax.random.split(key, 4)

    x = jax.random.normal(kx, (N, D), jnp.float32)
    wq, bq = _init_linear(kq, D, D)
    wk, bk = _init_linear(kk, D, D)
    wv, bv = _init_linear(kv, D, D)
    params = dict(wq=wq, bq=bq, wk=wk, bk=bk, wv=wv, bv=bv)

    # One-time weight padding / packing, hoisted out of the per-call path.
    prep = prepare_params(params, D)

    # block_rows=64 -> padded N=128, a 2-step grid over query tiles.
    out = attention_block(x, prep["wq"], prep["bq"], prep["wkv"], prep["bkv"],
                          activation="relu", block_rows=64)
    out = jax.block_until_ready(out)

    ref = _reference(x, params, activation="relu")
    assert out.shape == (N, D)
    # Tolerance accounts for bf16 MXU operands (f32 accumulation) and the
    # approximate EUP reciprocal in the row-normalize.
    assert jnp.allclose(out, ref, atol=2e-2, rtol=2e-2), "mismatch vs reference"

    print("KERNEL_OK")
</pallas_src>

<mosaic_0001>
module attributes {stable_mosaic.version = 11 : i64} {
  func.func @_fused_attention_kernel(%arg0: i32, %arg1: memref<128x128xf32, #tpu.memory_space<vmem>>, %arg2: memref<128x128xbf16, #tpu.memory_space<vmem>>, %arg3: memref<1x128xf32, #tpu.memory_space<vmem>>, %arg4: memref<128x256xbf16, #tpu.memory_space<vmem>>, %arg5: memref<1x256xf32, #tpu.memory_space<vmem>>, %arg6: memref<64x128xf32, #tpu.memory_space<vmem>>, %arg7: memref<128x128xbf16, #tpu.memory_space<vmem>>, %arg8: memref<128x128xbf16, #tpu.memory_space<vmem>>) attributes {dimension_semantics = [#tpu.dimension_semantics<arbitrary>], iteration_bounds = array<i64: 2>, scalar_prefetch = 0 : i64, scratch_operands = 2 : i64, tpu.core_type = #tpu.core_type<tc>, window_params = [{pipeline_mode = #tpu.pipeline_mode<synchronous>, transform_indices = @transform_0, window_bounds = array<i64: 128, 128>}, {pipeline_mode = #tpu.pipeline_mode<synchronous>, transform_indices = @transform_1, window_bounds = array<i64: 128, 128>}, {pipeline_mode = #tpu.pipeline_mode<synchronous>, transform_indices = @transform_2, window_bounds = array<i64: 1, 128>}, {pipeline_mode = #tpu.pipeline_mode<synchronous>, transform_indices = @transform_3, window_bounds = array<i64: 128, 256>}, {pipeline_mode = #tpu.pipeline_mode<synchronous>, transform_indices = @transform_4, window_bounds = array<i64: 1, 256>}, {transform_indices = @transform_5, window_bounds = array<i64: 64, 128>}]} {
    %c0_i32 = arith.constant 0 : i32
    %0 = arith.cmpi eq, %arg0, %c0_i32 : i32
    %1 = arith.extui %0 : i1 to i32
    %cst = arith.constant 1.000000e-24 : f32
    %c0_i32_0 = arith.constant 0 : i32
    %2 = arith.cmpi ne, %1, %c0_i32_0 : i32
    scf.if %2 {
      %c0_20 = arith.constant 0 : index
      %c0_21 = arith.constant 0 : index
      %45 = vector.load %arg1[%c0_20, %c0_21] : memref<128x128xf32, #tpu.memory_space<vmem>>, vector<128x128xf32>
      %46 = arith.truncf %45 : vector<128x128xf32> to vector<128x128xbf16>
      %c0_22 = arith.constant 0 : index
      %c0_23 = arith.constant 0 : index
      %47 = vector.load %arg4[%c0_22, %c0_23] : memref<128x256xbf16, #tpu.memory_space<vmem>>, vector<128x256xbf16>
      %cst_24 = arith.constant dense<0.000000e+00> : vector<128x256xf32>
      %48 = tpu.matmul %46, %47, %cst_24 {dimension_numbers = #tpu.dot_dimension_numbers<[1], [0], [0], [1], [0, 0, 1, 1], [], []>} : vector<128x128xbf16>, vector<128x256xbf16>, vector<128x256xf32> -> vector<128x256xf32>
      %c0_25 = arith.constant 0 : index
      %c0_26 = arith.constant 0 : index
      %49 = vector.load %arg5[%c0_25, %c0_26] : memref<1x256xf32, #tpu.memory_space<vmem>>, vector<1x256xf32>
      %50 = vector.broadcast %49 : vector<1x256xf32> to vector<128x256xf32>
      %51 = arith.addf %48, %50 : vector<128x256xf32>
      %52 = vector.extract_strided_slice %51 {offsets = [0, 0], sizes = [128, 128], strides = [1, 1]} : vector<128x256xf32> to vector<128x128xf32>
      %53 = vector.extract_strided_slice %51 {offsets = [0, 128], sizes = [128, 128], strides = [1, 1]} : vector<128x256xf32> to vector<128x128xf32>
      %54 = arith.mulf %52, %52 : vector<128x128xf32>
      %cst_27 = arith.constant dense<0.000000e+00> : vector<128xf32>
      %55 = vector.multi_reduction <add>, %54, %cst_27 [1] : vector<128x128xf32> to vector<128xf32>
      %56 = vector.shape_cast %55 : vector<128xf32> to vector<128x1xf32>
      %57 = vector.broadcast %cst : f32 to vector<128x1xf32>
      %58 = arith.maximumf %56, %57 : vector<128x1xf32>
      %59 = math.rsqrt %58 : vector<128x1xf32>
      %60 = vector.broadcast %59 : vector<128x1xf32> to vector<128x128xf32>
      %61 = arith.mulf %52, %60 : vector<128x128xf32>
      %62 = tpu.iota {dimensions = array<i32: 0>} : vector<128x128xi32>
      %c96_i32 = arith.constant 96 : i32
      %63 = vector.broadcast %c96_i32 : i32 to vector<128x128xi32>
      %64 = arith.cmpi slt, %62, %63 : vector<128x128xi32>
      %cst_28 = arith.constant 0.000000e+00 : f32
      %65 = vector.broadcast %cst_28 : f32 to vector<128x128xf32>
      %66 = arith.select %64, %61, %65 : vector<128x128xi1>, vector<128x128xf32>
      %67 = arith.truncf %66 : vector<128x128xf32> to vector<128x128xbf16>
      %c0_29 = arith.constant 0 : index
      %c0_30 = arith.constant 0 : index
      %68 = vector.load %arg7[%c0_29, %c0_30] : memref<128x128xbf16, #tpu.memory_space<vmem>>, vector<128x128xbf16>
      tpu.vector_store %arg7[%c0_29, %c0_30], %67 {strides = array<i32>} : memref<128x128xbf16, #tpu.memory_space<vmem>>, vector<128x128xbf16>,
      %69 = arith.truncf %53 : vector<128x128xf32> to vector<128x128xbf16>
      %c0_31 = arith.constant 0 : index
      %c0_32 = arith.constant 0 : index
      %70 = vector.load %arg8[%c0_31, %c0_32] : memref<128x128xbf16, #tpu.memory_space<vmem>>, vector<128x128xbf16>
      tpu.vector_store %arg8[%c0_31, %c0_32], %69 {strides = array<i32>} : memref<128x128xbf16, #tpu.memory_space<vmem>>, vector<128x128xbf16>,
    } else {
    }
    %c64_i32 = arith.constant 64 : i32
    %3 = arith.muli %arg0, %c64_i32 : i32
    %4 = tpu.assume_multiple %3, 64 : i32
    %5 = arith.index_cast %4 : i32 to index
    %c0 = arith.constant 0 : index
    %6 = vector.load %arg1[%5, %c0] : memref<128x128xf32, #tpu.memory_space<vmem>>, vector<64x128xf32>
    %7 = arith.truncf %6 : vector<64x128xf32> to vector<64x128xbf16>
    %c0_1 = arith.constant 0 : index
    %c0_2 = arith.constant 0 : index
    %8 = vector.load %arg2[%c0_1, %c0_2] : memref<128x128xbf16, #tpu.memory_space<vmem>>, vector<128x128xbf16>
    %cst_3 = arith.constant dense<0.000000e+00> : vector<64x128xf32>
    %9 = tpu.matmul %7, %8, %cst_3 {dimension_numbers = #tpu.dot_dimension_numbers<[1], [0], [0], [1], [0, 0, 1, 1], [], []>} : vector<64x128xbf16>, vector<128x128xbf16>, vector<64x128xf32> -> vector<64x128xf32>
    %c0_4 = arith.constant 0 : index
    %c0_5 = arith.constant 0 : index
    %10 = vector.load %arg3[%c0_4, %c0_5] : memref<1x128xf32, #tpu.memory_space<vmem>>, vector<1x128xf32>
    %11 = vector.broadcast %10 : vector<1x128xf32> to vector<64x128xf32>
    %12 = arith.addf %9, %11 : vector<64x128xf32>
    %13 = arith.mulf %12, %12 : vector<64x128xf32>
    %cst_6 = arith.constant dense<0.000000e+00> : vector<64xf32>
    %14 = vector.multi_reduction <add>, %13, %cst_6 [1] : vector<64x128xf32> to vector<64xf32>
    %15 = vector.shape_cast %14 : vector<64xf32> to vector<64x1xf32>
    %cst_7 = arith.constant 1.000000e-24 : f32
    %16 = vector.broadcast %cst_7 : f32 to vector<64x1xf32>
    %17 = arith.maximumf %15, %16 : vector<64x1xf32>
    %18 = math.rsqrt %17 : vector<64x1xf32>
    %19 = vector.broadcast %18 : vector<64x1xf32> to vector<64x128xf32>
    %20 = arith.mulf %12, %19 : vector<64x128xf32>
    %21 = arith.truncf %20 : vector<64x128xf32> to vector<64x128xbf16>
    %c0_8 = arith.constant 0 : index
    %c0_9 = arith.constant 0 : index
    %22 = vector.load %arg7[%c0_8, %c0_9] : memref<128x128xbf16, #tpu.memory_space<vmem>>, vector<128x128xbf16>
    %cst_10 = arith.constant dense<0.000000e+00> : vector<64x128xf32>
    %23 = tpu.matmul %21, %22, %cst_10 {dimension_numbers = #tpu.dot_dimension_numbers<[1], [1], [0], [0], [0, 0, 1, 0], [], []>} : vector<64x128xbf16>, vector<128x128xbf16>, vector<64x128xf32> -> vector<64x128xf32>
    %cst_11 = arith.constant 0.000000e+00 : f32
    %24 = vector.broadcast %cst_11 : f32 to vector<64x128xf32>
    %25 = arith.maximumf %23, %24 : vector<64x128xf32>
    %26 = tpu.iota {dimensions = array<i32: 0>} : vector<64x128xi32>
    %27 = vector.broadcast %4 : i32 to vector<64x128xi32>
    %28 = arith.addi %26, %27 : vector<64x128xi32>
    %29 = tpu.iota {dimensions = array<i32: 1>} : vector<64x128xi32>
    %30 = arith.cmpi eq, %29, %28 : vector<64x128xi32>
    %cst_12 = arith.constant 0.000000e+00 : f32
    %31 = vector.broadcast %cst_12 : f32 to vector<64x128xf32>
    %32 = arith.select %30, %31, %25 : vector<64x128xi1>, vector<64x128xf32>
    %cst_13 = arith.constant dense<0.000000e+00> : vector<64xf32>
    %33 = vector.multi_reduction <add>, %32, %cst_13 [1] : vector<64x128xf32> to vector<64xf32>
    %34 = vector.shape_cast %33 : vector<64xf32> to vector<64x1xf32>
    %cst_14 = arith.constant 9.99999996E-13 : f32
    %35 = vector.broadcast %cst_14 : f32 to vector<64x1xf32>
    %36 = arith.maximumf %34, %35 : vector<64x1xf32>
    %37 = tpu.reciprocal %36 {approx = true} : vector<64x1xf32> -> vector<64x1xf32>
    %38 = vector.broadcast %37 : vector<64x1xf32> to vector<64x128xf32>
    %39 = arith.mulf %32, %38 : vector<64x128xf32>
    %40 = arith.truncf %39 : vector<64x128xf32> to vector<64x128xbf16>
    %c0_15 = arith.constant 0 : index
    %c0_16 = arith.constant 0 : index
    %41 = vector.load %arg8[%c0_15, %c0_16] : memref<128x128xbf16, #tpu.memory_space<vmem>>, vector<128x128xbf16>
    %cst_17 = arith.constant dense<0.000000e+00> : vector<64x128xf32>
    %42 = tpu.matmul %40, %41, %cst_17 {dimension_numbers = #tpu.dot_dimension_numbers<[1], [0], [0], [1], [0, 0, 1, 1], [], []>} : vector<64x128xbf16>, vector<128x128xbf16>, vector<64x128xf32> -> vector<64x128xf32>
    %43 = arith.addf %42, %6 : vector<64x128xf32>
    %c0_18 = arith.constant 0 : index
    %c0_19 = arith.constant 0 : index
    %44 = vector.load %arg6[%c0_18, %c0_19] : memref<64x128xf32, #tpu.memory_space<vmem>>, vector<64x128xf32>
    tpu.vector_store %arg6[%c0_18, %c0_19], %43 {strides = array<i32>} : memref<64x128xf32, #tpu.memory_space<vmem>>, vector<64x128xf32>,
    return
  }
  func.func @transform_0(%arg0: i32) -> (i32, i32) {
    %c0_i32 = arith.constant 0 : i32
    %c0_i32_0 = arith.constant 0 : i32
    %c0_i32_1 = arith.constant 0 : i32
    return %c0_i32, %c0_i32_0 : i32, i32
  }
  func.func @transform_1(%arg0: i32) -> (i32, i32) {
    %c0_i32 = arith.constant 0 : i32
    %c0_i32_0 = arith.constant 0 : i32
    %c0_i32_1 = arith.constant 0 : i32
    return %c0_i32, %c0_i32_0 : i32, i32
  }
  func.func @transform_2(%arg0: i32) -> (i32, i32) {
    %c0_i32 = arith.constant 0 : i32
    %c0_i32_0 = arith.constant 0 : i32
    %c0_i32_1 = arith.constant 0 : i32
    return %c0_i32, %c0_i32_0 : i32, i32
  }
  func.func @transform_3(%arg0: i32) -> (i32, i32) {
    %c0_i32 = arith.constant 0 : i32
    %c0_i32_0 = arith.constant 0 : i32
    %c0_i32_1 = arith.constant 0 : i32
    return %c0_i32, %c0_i32_0 : i32, i32
  }
  func.func @transform_4(%arg0: i32) -> (i32, i32) {
    %c0_i32 = arith.constant 0 : i32
    %c0_i32_0 = arith.constant 0 : i32
    %c0_i32_1 = arith.constant 0 : i32
    return %c0_i32, %c0_i32_0 : i32, i32
  }
  func.func @transform_5(%arg0: i32) -> (i32, i32) {
    %c0_i32 = arith.constant 0 : i32
    %c0_i32_0 = arith.constant 0 : i32
    return %arg0, %c0_i32 : i32, i32
  }
}

</mosaic_0001>

<llo_original>
// kernel: attention_block.1
$region0: #{attention_block.1}
  #allocation0 [shape = 'u32[]', space=smem, size = 0x4, offset = 0x4, fixed_abs, tag = 'smem constant byte address 0x4 - core index']
  #allocation1 [shape = 'u32[72,128]{1,0:T(1,128)}', space=vmem, size = 0x9000, scoped, tag = 'internal scratch']
  #allocation2 [shape = 'bf16[128,128]{1,0:T(8,128)(2,1)}', space=vmem, size = 0x8000, scoped, tag = 'scratch operand']
  #allocation3 [shape = 'bf16[128,128]{1,0:T(8,128)(2,1)}', space=vmem, size = 0x8000, scoped, tag = 'scratch operand']
  %s0 = inlined_call_operand.vmem [shape: f32[128,128], index: 0, kind: input, shape index: {}]
  %s1 = inlined_call_operand.vmem [shape: bf16[128,128], index: 1, kind: input, shape index: {}]
  %s2 = inlined_call_operand.vmem [shape: f32[1,128], index: 2, kind: input, shape index: {}]
  %s3 = inlined_call_operand.vmem [shape: bf16[128,256], index: 3, kind: input, shape index: {}]
  %s4 = inlined_call_operand.vmem [shape: f32[1,256], index: 4, kind: input, shape index: {}]
  %s5 = inlined_call_operand.vmem [shape: f32[128,128], index: 5, kind: output, shape index: {}]
  %s6 = sld [smem:[#allocation0]]
  $region57: #{attention_block.1} parent=0
    _
  %s8 = ssub.s32 1, %s6
  %s9 = scalar_select 0, %s8, %s6
  loop: start=0, step=1, limit=4
  $region2: #{attention_block.1} parent=0 // loop_pre_header
    _
  $region3: #{attention_block.1} parent=0 // loop_header
    %s11 = sphi 0, %s15
    %p12 = scmp.ge.s32.totalorder %s11, 4
    %s19 = sphi 0, %s19
    %s21 = sphi 0, %s19
    %s22 = sphi 0, %s21
    %s36 = sphi 0, %s22
    %s40 = sphi 0, %s40
    %s42 = sphi 0, %s40
    %s43 = sphi 0, %s42
    %s57 = sphi 0, %s43
    %s61 = sphi 0, %s61
    %s63 = sphi 0, %s61
    %s64 = sphi 0, %s63
    %s78 = sphi 0, %s64
    %s82 = sphi 0, %s82
    %s84 = sphi 0, %s82
    %s85 = sphi 0, %s84
    %s99 = sphi 0, %s85
    %s103 = sphi 0, %s103
    %s105 = sphi 0, %s103
    %s106 = sphi 0, %s105
    %s120 = sphi 0, %s106
    %s126 = sphi 0, %s128
    %s129 = sphi 0, %s126
    %s130 = sphi 0, %s129
    %s146 = sphi 0, %s130
  $region4: #{attention_block.1} parent=0 // loop_header_branch
    %14 = sbr.rel (%p12) target = $region8
  $region5: #{attention_block.1} parent=0 // loop_body
    %s16 = ssub.s32 %s11, 1
    %s17 = ssub.s32 %s11, 2
    %s18 = sadd.s32 %s11, 1
    %s20 = sadd.s32 %s19, 1
    %p23 = scmp.eq.s32.totalorder %s11, 1
    %p24 = scmp.ne.s32.totalorder %s19, %s21
    %p25 = scmp.eq.s32.totalorder %s11, 0
    %p26 = por %p24, %p25
    %p27 = scmp.ne.s32.totalorder %s19, %s21
    %p28 = scmp.eq.s32.totalorder %s16, 1
    %p29 = por %p27, %p28
    %p30 = scmp.ne.s32.totalorder %s21, %s22
    %p31 = scmp.eq.s32.totalorder %s16, 0
    %p32 = por %p30, %p31
    %p33 = scmp.ne.s32.totalorder %s21, %s22
    %p34 = scmp.eq.s32.totalorder %s17, 1
    %p35 = por %p33, %p34
    %p37 = scmp.ne.s32.totalorder %s22, %s36
    %p38 = scmp.eq.s32.totalorder %s17, 0
    %p39 = por %p37, %p38
    %s41 = sadd.s32 %s40, 1
    %p44 = scmp.eq.s32.totalorder %s11, 1
    %p45 = scmp.ne.s32.totalorder %s40, %s42
    %p46 = scmp.eq.s32.totalorder %s11, 0
    %p47 = por %p45, %p46
    %p48 = scmp.ne.s32.totalorder %s40, %s42
    %p49 = scmp.eq.s32.totalorder %s16, 1
    %p50 = por %p48, %p49
    %p51 = scmp.ne.s32.totalorder %s42, %s43
    %p52 = scmp.eq.s32.totalorder %s16, 0
    %p53 = por %p51, %p52
    %p54 = scmp.ne.s32.totalorder %s42, %s43
    %p55 = scmp.eq.s32.totalorder %s17, 1
    %p56 = por %p54, %p55
    %p58 = scmp.ne.s32.totalorder %s43, %s57
    %p59 = scmp.eq.s32.totalorder %s17, 0
    %p60 = por %p58, %p59
    %s62 = sadd.s32 %s61, 1
    %p65 = scmp.eq.s32.totalorder %s11, 1
    %p66 = scmp.ne.s32.totalorder %s61, %s63
    %p67 = scmp.eq.s32.totalorder %s11, 0
    %p68 = por %p66, %p67
    %p69 = scmp.ne.s32.totalorder %s61, %s63
    %p70 = scmp.eq.s32.totalorder %s16, 1
    %p71 = por %p69, %p70
    %p72 = scmp.ne.s32.totalorder %s63, %s64
    %p73 = scmp.eq.s32.totalorder %s16, 0
    %p74 = por %p72, %p73
    %p75 = scmp.ne.s32.totalorder %s63, %s64
    %p76 = scmp.eq.s32.totalorder %s17, 1
    %p77 = por %p75, %p76
    %p79 = scmp.ne.s32.totalorder %s64, %s78
    %p80 = scmp.eq.s32.totalorder %s17, 0
    %p81 = por %p79, %p80
    %s83 = sadd.s32 %s82, 1
    %p86 = scmp.eq.s32.totalorder %s11, 1
    %p87 = scmp.ne.s32.totalorder %s82, %s84
    %p88 = scmp.eq.s32.totalorder %s11, 0
    %p89 = por %p87, %p88
    %p90 = scmp.ne.s32.totalorder %s82, %s84
    %p91 = scmp.eq.s32.totalorder %s16, 1
    %p92 = por %p90, %p91
    %p93 = scmp.ne.s32.totalorder %s84, %s85
    %p94 = scmp.eq.s32.totalorder %s16, 0
    %p95 = por %p93, %p94
    %p96 = scmp.ne.s32.totalorder %s84, %s85
    %p97 = scmp.eq.s32.totalorder %s17, 1
    %p98 = por %p96, %p97
    %p100 = scmp.ne.s32.totalorder %s85, %s99
    %p101 = scmp.eq.s32.totalorder %s17, 0
    %p102 = por %p100, %p101
    %s104 = sadd.s32 %s103, 1
    %p107 = scmp.eq.s32.totalorder %s11, 1
    %p108 = scmp.ne.s32.totalorder %s103, %s105
    %p109 = scmp.eq.s32.totalorder %s11, 0
    %p110 = por %p108, %p109
    %p111 = scmp.ne.s32.totalorder %s103, %s105
    %p112 = scmp.eq.s32.totalorder %s16, 1
    %p113 = por %p111, %p112
    %p114 = scmp.ne.s32.totalorder %s105, %s106
    %p115 = scmp.eq.s32.totalorder %s16, 0
    %p116 = por %p114, %p115
    %p117 = scmp.ne.s32.totalorder %s105, %s106
    %p118 = scmp.eq.s32.totalorder %s17, 1
    %p119 = por %p117, %p118
    %p121 = scmp.ne.s32.totalorder %s106, %s120
    %p122 = scmp.eq.s32.totalorder %s17, 0
    %p123 = por %p121, %p122
    %s124 = ssub.s32 %s11, %s18
    %p125 = scmp.eq.s32.totalorder %s124, 0
    %s127 = sadd.s32 %s126, 1
    %s128 = scalar_select %p125, %s126, %s127
    %p131 = pneg %p125
    %p132 = scmp.eq.s32.totalorder %s11, 1
    %p133 = por %p131, %p132
    %p134 = scmp.ne.s32.totalorder %s126, %s129
    %p135 = scmp.eq.s32.totalorder %s11, 0
    %p136 = por %p134, %p135
    %p137 = scmp.ne.s32.totalorder %s126, %s129
    %p138 = scmp.eq.s32.totalorder %s16, 1
    %p139 = por %p137, %p138
    %p140 = scmp.ne.s32.totalorder %s129, %s130
    %p141 = scmp.eq.s32.totalorder %s16, 0
    %p142 = por %p140, %p141
    %p143 = scmp.ne.s32.totalorder %s129, %s130
    %p144 = scmp.eq.s32.totalorder %s17, 1
    %p145 = por %p143, %p144
    %p147 = scmp.ne.s32.totalorder %s130, %s146
    %p148 = scmp.eq.s32.totalorder %s17, 0
    %p149 = por %p147, %p148
    %p150 = scmp.le.s32.totalorder 1, %s11
    %p151 = scmp.lt.s32.totalorder %s11, 3
    %p152 = pnand %p150, %p151
    %p153 = pneg %p152
    // Predicated region
    $region9: #{attention_block.1} parent=5 // pred_check
      _
    $region10: #{attention_block.1} parent=5 // pred_check_branch
      %155 = sbr.rel (%p152) target = $region12
    $region11: #{attention_block.1} parent=5 // pred_region
      %s156 = ssub.s32 %s11, 1
      // Predicated region
      $region13: #{attention_block.1} parent=11 // pred_check
        %p157 = pneg %p32
      $region14: #{attention_block.1} parent=11 // pred_check_branch
        %159 = sbr.rel (%p157) target = $region16
      $region15: #{attention_block.1} parent=11 // pred_region
        _
      $region16: #{attention_block.1} parent=11 // pred_fallthru
        _
      // Predicated region
      $region17: #{attention_block.1} parent=11 // pred_check
        %p160 = pneg %p53
      $region18: #{attention_block.1} parent=11 // pred_check_branch
        %162 = sbr.rel (%p160) target = $region20
      $region19: #{attention_block.1} parent=11 // pred_region
        _
      $region20: #{attention_block.1} parent=11 // pred_fallthru
        _
      // Predicated region
      $region21: #{attention_block.1} parent=11 // pred_check
        %p163 = pneg %p74
      $region22: #{attention_block.1} parent=11 // pred_check_branch
        %165 = sbr.rel (%p163) target = $region24
      $region23: #{attention_block.1} parent=11 // pred_region
        _
      $region24: #{attention_block.1} parent=11 // pred_fallthru
        _
      // Predicated region
      $region25: #{attention_block.1} parent=11 // pred_check
        %p166 = pneg %p95
      $region26: #{attention_block.1} parent=11 // pred_check_branch
        %168 = sbr.rel (%p166) target = $region28
      $region27: #{attention_block.1} parent=11 // pred_region
        _
      $region28: #{attention_block.1} parent=11 // pred_fallthru
        _
      // Predicated region
      $region29: #{attention_block.1} parent=11 // pred_check
        %p169 = pneg %p116
      $region30: #{attention_block.1} parent=11 // pred_check_branch
        %171 = sbr.rel (%p169) target = $region32
      $region31: #{attention_block.1} parent=11 // pred_region
        _
      $region32: #{attention_block.1} parent=11 // pred_fallthru
        _
    $region12: #{attention_block.1} parent=5 // pred_fallthru
      _
    %p172 = scmp.lt.s32.totalorder %s11, 2
    // Predicated region
    $region33: #{attention_block.1} parent=5 // pred_check
      %p173 = pneg %p172
    $region34: #{attention_block.1} parent=5 // pred_check_branch
      %175 = sbr.rel (%p173) target = $region36
    $region35: #{attention_block.1} parent=5 // pred_region
      _
    $region36: #{attention_block.1} parent=5 // pred_fallthru
      _
    %p176 = scmp.le.s32.totalorder 1, %s11
    %p177 = scmp.lt.s32.totalorder %s11, 3
    %p178 = pnand %p176, %p177
    %p179 = pneg %p178
    // Predicated region
    $region37: #{attention_block.1} parent=5 // pred_check
      _
    $region38: #{attention_block.1} parent=5 // pred_check_branch
      %181 = sbr.rel (%p178) target = $region40
    $region39: #{attention_block.1} parent=5 // pred_region
      %s182 = ssub.s32 %s11, 1
      %p183 = pneg %p32
      %p184 = pneg %p29
      %p185 = pneg %p53
      %p186 = pneg %p50
      %p187 = pneg %p74
      %p188 = pneg %p71
      %p189 = pneg %p95
      %p190 = pneg %p92
      %p191 = pneg %p116
      %p192 = pneg %p113
      %p193 = pneg %p142
      %p194 = pneg %p139
      %s195 = smul.u32 8, %s16
      %p196 = scmp.lt.s32.totalorder %s195, 15
      %s197 = scalar_select %p196, %s195, 15
      %s198 = smul.addr %s197, 8
      %s199 = scalar_lea.vmem %s5, %s198
      %s200 = smul.u32 8, %s16
      %p201 = scmp.lt.s32.totalorder %s200, 15
      %s202 = scalar_select %p201, %s200, 15
      %s203 = smul.addr %s202, 8
      %s204 = scalar_lea.vmem %s5, %s203
      %s205 = smul.u32 8, %s16
      %p206 = scmp.eq.s32.totalorder %s16, 0
      // Predicated region
      $region41: #{attention_block.1} parent=39 // pred_check
        %p207 = pneg %p206
      $region42: #{attention_block.1} parent=39 // pred_check_branch
        %209 = sbr.rel (%p207) target = $region44
      $region43: #{attention_block.1} parent=39 // pred_region
        %v210 = vld [vmem:[%s0] sm:$0xff]
        %v211 = vld [vmem:[%s0 + $0x8] sm:$0xff]
        %v212 = vld [vmem:[%s0 + $0x10] sm:$0xff]
        %v213 = vld [vmem:[%s0 + $0x18] sm:$0xff]
        %v214 = vld [vmem:[%s0 + $0x20] sm:$0xff]
        %v215 = vld [vmem:[%s0 + $0x28] sm:$0xff]
        %v216 = vld [vmem:[%s0 + $0x30] sm:$0xff]
        %v217 = vld [vmem:[%s0 + $0x38] sm:$0xff]
        %v218 = vld [vmem:[%s0 + $0x40] sm:$0xff]
        %v219 = vld [vmem:[%s0 + $0x48] sm:$0xff]
        %v220 = vld [vmem:[%s0 + $0x50] sm:$0xff]
        %v221 = vld [vmem:[%s0 + $0x58] sm:$0xff]
        %v222 = vld [vmem:[%s0 + $0x60] sm:$0xff]
        %v223 = vld [vmem:[%s0 + $0x68] sm:$0xff]
        %v224 = vld [vmem:[%s0 + $0x70] sm:$0xff]
        %v225 = vld [vmem:[%s0 + $0x78] sm:$0xff]
        %v226 = vpack.c.bf16 %v211, %v210
        %v227 = vpack.c.bf16 %v213, %v212
        %v228 = vpack.c.bf16 %v215, %v214
        %v229 = vpack.c.bf16 %v217, %v216
        %v230 = vpack.c.bf16 %v219, %v218
        %v231 = vpack.c.bf16 %v221, %v220
        %v232 = vpack.c.bf16 %v223, %v222
        %v233 = vpack.c.bf16 %v225, %v224
        %v234 = vld [vmem:[%s3] sm:$0xff]
        %v235 = vld [vmem:[%s3 + $0x8] sm:$0xff]
        %v236 = vld [vmem:[%s3 + $0x10] sm:$0xff]
        %v237 = vld [vmem:[%s3 + $0x18] sm:$0xff]
        %v238 = vld [vmem:[%s3 + $0x20] sm:$0xff]
        %v239 = vld [vmem:[%s3 + $0x28] sm:$0xff]
        %v240 = vld [vmem:[%s3 + $0x30] sm:$0xff]
        %v241 = vld [vmem:[%s3 + $0x38] sm:$0xff]
        %v242 = vld [vmem:[%s3 + $0x40] sm:$0xff]
        %v243 = vld [vmem:[%s3 + $0x48] sm:$0xff]
        %v244 = vld [vmem:[%s3 + $0x50] sm:$0xff]
        %v245 = vld [vmem:[%s3 + $0x58] sm:$0xff]
        %v246 = vld [vmem:[%s3 + $0x60] sm:$0xff]
        %v247 = vld [vmem:[%s3 + $0x68] sm:$0xff]
        %v248 = vld [vmem:[%s3 + $0x70] sm:$0xff]
        %v249 = vld [vmem:[%s3 + $0x78] sm:$0xff]
        %v250 = vld [vmem:[%s4] sm:$0x3]
        %v252 = vperm.slane %v250, 0
        %v253 = vperm.slane %v250, 1
        %v272 = vunpack.c.l.b16 %v234
        %v273 = vunpack.c.h.b16 %v234
        %v274 = vunpack.c.l.b16 %v235
        %v275 = vunpack.c.h.b16 %v235
        %v276 = vunpack.c.l.b16 %v236
        %v277 = vunpack.c.h.b16 %v236
        %v278 = vunpack.c.l.b16 %v237
        %v279 = vunpack.c.h.b16 %v237
        %v280 = vunpack.c.l.b16 %v238
        %v281 = vunpack.c.h.b16 %v238
        %v282 = vunpack.c.l.b16 %v239
        %v283 = vunpack.c.h.b16 %v239
        %v284 = vunpack.c.l.b16 %v240
        %v285 = vunpack.c.h.b16 %v240
        %v286 = vunpack.c.l.b16 %v241
        %v287 = vunpack.c.h.b16 %v241
        %v288 = vunpack.c.l.b16 %v242
        %v289 = vunpack.c.h.b16 %v242
        %v290 = vunpack.c.l.b16 %v243
        %v291 = vunpack.c.h.b16 %v243
        %v292 = vunpack.c.l.b16 %v244
        %v293 = vunpack.c.h.b16 %v244
        %v294 = vunpack.c.l.b16 %v245
        %v295 = vunpack.c.h.b16 %v245
        %v296 = vunpack.c.l.b16 %v246
        %v297 = vunpack.c.h.b16 %v246
        %v298 = vunpack.c.l.b16 %v247
        %v299 = vunpack.c.h.b16 %v247
        %v300 = vunpack.c.l.b16 %v248
        %v301 = vunpack.c.h.b16 %v248
        %v302 = vunpack.c.l.b16 %v249
        %v303 = vunpack.c.h.b16 %v249
        %v304 = vpack.c.b16 %v274, %v272
        %v305 = vpack.c.b16 %v275, %v273
        %v306 = vpack.c.b16 %v278, %v276
        %v307 = vpack.c.b16 %v279, %v277
        %v308 = vpack.c.b16 %v282, %v280
        %v309 = vpack.c.b16 %v283, %v281
        %v310 = vpack.c.b16 %v286, %v284
        %v311 = vpack.c.b16 %v287, %v285
        %v312 = vpack.c.b16 %v290, %v288
        %v313 = vpack.c.b16 %v291, %v289
        %v314 = vpack.c.b16 %v294, %v292
        %v315 = vpack.c.b16 %v295, %v293
        %v316 = vpack.c.b16 %v298, %v296
        %v317 = vpack.c.b16 %v299, %v297
        %v318 = vpack.c.b16 %v302, %v300
        %v319 = vpack.c.b16 %v303, %v301
        %336 = vmatpush.bf16.msra.mxu0 %v318
        %337 = vmatpush.bf16.msra.mxu0 %v316
        %338 = vmatpush.bf16.msra.mxu0 %v314
        %339 = vmatpush.bf16.msra.mxu0 %v312
        %340 = vmatpush.bf16.msra.mxu0 %v310
        %341 = vmatpush.bf16.msra.mxu0 %v308
        %342 = vmatpush.bf16.msra.mxu0 %v306
        %343 = vmatpush.bf16.msra.mxu0 %v304
        %344 = vmatmul.bf16.gmra.mxu0 %v226
        %v345 = vpop.f32.mrf.mxu0
        %v346 = vadd.f32 %v252, %v345
        %v347 = vpop.f32.mrf.mxu0
        %v348 = vadd.f32 %v252, %v347
        %349 = vmatmul.bf16.gmra.mxu0 %v227
        %v350 = vpop.f32.mrf.mxu0
        %v351 = vadd.f32 %v252, %v350
        %v352 = vpop.f32.mrf.mxu0
        %v353 = vadd.f32 %v252, %v352
        %354 = vmatmul.bf16.gmra.mxu0 %v228
        %v355 = vpop.f32.mrf.mxu0
        %v356 = vadd.f32 %v252, %v355
        %v357 = vpop.f32.mrf.mxu0
        %v358 = vadd.f32 %v252, %v357
        %359 = vmatmul.bf16.gmra.mxu0 %v229
        %v360 = vpop.f32.mrf.mxu0
        %v361 = vadd.f32 %v252, %v360
        %v362 = vpop.f32.mrf.mxu0
        %v363 = vadd.f32 %v252, %v362
        %364 = vmatmul.bf16.gmra.mxu0 %v230
        %v365 = vpop.f32.mrf.mxu0
        %v366 = vadd.f32 %v252, %v365
        %v367 = vpop.f32.mrf.mxu0
        %v368 = vadd.f32 %v252, %v367
        %369 = vmatmul.bf16.gmra.mxu0 %v231
        %v370 = vpop.f32.mrf.mxu0
        %v371 = vadd.f32 %v252, %v370
        %v372 = vpop.f32.mrf.mxu0
        %v373 = vadd.f32 %v252, %v372
        %374 = vmatmul.bf16.gmra.mxu0 %v232
        %v375 = vpop.f32.mrf.mxu0
        %v376 = vadd.f32 %v252, %v375
        %v377 = vpop.f32.mrf.mxu0
        %v378 = vadd.f32 %v252, %v377
        %379 = vmatmul.bf16.gmra.mxu0 %v233
        %v380 = vpop.f32.mrf.mxu0
        %v381 = vadd.f32 %v252, %v380
        %v382 = vpop.f32.mrf.mxu0
        %v383 = vadd.f32 %v252, %v382
        %384 = vdwg.mxu0
        %385 = vmatpush.bf16.msra.mxu0 %v319
        %386 = vmatpush.bf16.msra.mxu0 %v317
        %387 = vmatpush.bf16.msra.mxu0 %v315
        %388 = vmatpush.bf16.msra.mxu0 %v313
        %389 = vmatpush.bf16.msra.mxu0 %v311
        %390 = vmatpush.bf16.msra.mxu0 %v309
        %391 = vmatpush.bf16.msra.mxu0 %v307
        %392 = vmatpush.bf16.msra.mxu0 %v305
        %393 = vmatmul.bf16.gmra.mxu0 %v226
        %v394 = vpop.f32.mrf.mxu0
        %v395 = vadd.f32 %v253, %v394
        %v396 = vpop.f32.mrf.mxu0
        %v397 = vadd.f32 %v253, %v396
        %398 = vmatmul.bf16.gmra.mxu0 %v227
        %v399 = vpop.f32.mrf.mxu0
        %v400 = vadd.f32 %v253, %v399
        %v401 = vpop.f32.mrf.mxu0
        %v402 = vadd.f32 %v253, %v401
        %403 = vmatmul.bf16.gmra.mxu0 %v228
        %v404 = vpop.f32.mrf.mxu0
        %v405 = vadd.f32 %v253, %v404
        %v406 = vpop.f32.mrf.mxu0
        %v407 = vadd.f32 %v253, %v406
        %408 = vmatmul.bf16.gmra.mxu0 %v229
        %v409 = vpop.f32.mrf.mxu0
        %v410 = vadd.f32 %v253, %v409
        %v411 = vpop.f32.mrf.mxu0
        %v412 = vadd.f32 %v253, %v411
        %413 = vmatmul.bf16.gmra.mxu0 %v230
        %v414 = vpop.f32.mrf.mxu0
        %v415 = vadd.f32 %v253, %v414
        %v416 = vpop.f32.mrf.mxu0
        %v417 = vadd.f32 %v253, %v416
        %418 = vmatmul.bf16.gmra.mxu0 %v231
        %v419 = vpop.f32.mrf.mxu0
        %v420 = vadd.f32 %v253, %v419
        %v421 = vpop.f32.mrf.mxu0
        %v422 = vadd.f32 %v253, %v421
        %423 = vmatmul.bf16.gmra.mxu0 %v232
        %v424 = vpop.f32.mrf.mxu0
        %v425 = vadd.f32 %v253, %v424
        %v426 = vpop.f32.mrf.mxu0
        %v427 = vadd.f32 %v253, %v426
        %428 = vmatmul.bf16.gmra.mxu0 %v233
        %v429 = vpop.f32.mrf.mxu0
        %v430 = vadd.f32 %v253, %v429
        %v431 = vpop.f32.mrf.mxu0
        %v432 = vadd.f32 %v253, %v431
        %433 = vdwg.mxu0
        %v434 = vmul.f32 %v346, %v346
        %v435 = vmul.f32 %v348, %v348
        %v436 = vmul.f32 %v351, %v351
        %v437 = vmul.f32 %v353, %v353
        %v438 = vmul.f32 %v356, %v356
        %v439 = vmul.f32 %v358, %v358
        %v440 = vmul.f32 %v361, %v361
        %v441 = vmul.f32 %v363, %v363
        %v442 = vmul.f32 %v366, %v366
        %v443 = vmul.f32 %v368, %v368
        %v444 = vmul.f32 %v371, %v371
        %v445 = vmul.f32 %v373, %v373
        %v446 = vmul.f32 %v376, %v376
        %v447 = vmul.f32 %v378, %v378
        %v448 = vmul.f32 %v381, %v381
        %v449 = vmul.f32 %v383, %v383
        %450 = vadd.xlane.f32.xlu0 %v434
        %v451 = vpop.xlane.xlu0 %450
        %452 = vadd.xlane.f32.xlu0 %v435
        %v453 = vpop.xlane.xlu0 %452
        %454 = vadd.xlane.f32.xlu0 %v436
        %v455 = vpop.xlane.xlu0 %454
        %456 = vadd.xlane.f32.xlu0 %v437
        %v457 = vpop.xlane.xlu0 %456
        %458 = vadd.xlane.f32.xlu0 %v438
        %v459 = vpop.xlane.xlu0 %458
        %460 = vadd.xlane.f32.xlu0 %v439
        %v461 = vpop.xlane.xlu0 %460
        %462 = vadd.xlane.f32.xlu0 %v440
        %v463 = vpop.xlane.xlu0 %462
        %464 = vadd.xlane.f32.xlu0 %v441
        %v465 = vpop.xlane.xlu0 %464
        %466 = vadd.xlane.f32.xlu0 %v442
        %v467 = vpop.xlane.xlu0 %466
        %468 = vadd.xlane.f32.xlu0 %v443
        %v469 = vpop.xlane.xlu0 %468
        %470 = vadd.xlane.f32.xlu0 %v444
        %v471 = vpop.xlane.xlu0 %470
        %472 = vadd.xlane.f32.xlu0 %v445
        %v473 = vpop.xlane.xlu0 %472
        %474 = vadd.xlane.f32.xlu0 %v446
        %v475 = vpop.xlane.xlu0 %474
        %476 = vadd.xlane.f32.xlu0 %v447
        %v477 = vpop.xlane.xlu0 %476
        %478 = vadd.xlane.f32.xlu0 %v448
        %v479 = vpop.xlane.xlu0 %478
        %480 = vadd.xlane.f32.xlu0 %v449
        %v481 = vpop.xlane.xlu0 %480
        %v482 = vmax.f32 %v451, 1e-24
        %v483 = vmax.f32 %v453, 1e-24
        %v484 = vmax.f32 %v455, 1e-24
        %v485 = vmax.f32 %v457, 1e-24
        %v486 = vmax.f32 %v459, 1e-24
        %v487 = vmax.f32 %v461, 1e-24
        %v488 = vmax.f32 %v463, 1e-24
        %v489 = vmax.f32 %v465, 1e-24
        %v490 = vmax.f32 %v467, 1e-24
        %v491 = vmax.f32 %v469, 1e-24
        %v492 = vmax.f32 %v471, 1e-24
        %v493 = vmax.f32 %v473, 1e-24
        %v494 = vmax.f32 %v475, 1e-24
        %v495 = vmax.f32 %v477, 1e-24
        %v496 = vmax.f32 %v479, 1e-24
        %v497 = vmax.f32 %v481, 1e-24
        %v498 = vrsqrt.pop %v482
        %v499 = vmul.f32 %v498, %v482
        %v500 = vmul.f32 %v499, %v498
        %v501 = vmul.f32 0.5, %v500
        %v502 = vsub.f32 1.5, %v501
        %v503 = vmul.f32 %v498, %v502
        %vm504 = vweird.f32 %v482
        %vm505 = vweird.f32 %v498
        %vm506 = vmor %vm504, %vm505
        %v507 = vsel %vm506, %v498, %v503
        %v508 = vrsqrt.pop %v483
        %v509 = vmul.f32 %v508, %v483
        %v510 = vmul.f32 %v509, %v508
        %v511 = vmul.f32 0.5, %v510
        %v512 = vsub.f32 1.5, %v511
        %v513 = vmul.f32 %v508, %v512
        %vm514 = vweird.f32 %v483
        %vm515 = vweird.f32 %v508
        %vm516 = vmor %vm514, %vm515
        %v517 = vsel %vm516, %v508, %v513
        %v518 = vrsqrt.pop %v484
        %v519 = vmul.f32 %v518, %v484
        %v520 = vmul.f32 %v519, %v518
        %v521 = vmul.f32 0.5, %v520
        %v522 = vsub.f32 1.5, %v521
        %v523 = vmul.f32 %v518, %v522
        %vm524 = vweird.f32 %v484
        %vm525 = vweird.f32 %v518
        %vm526 = vmor %vm524, %vm525
        %v527 = vsel %vm526, %v518, %v523
        %v528 = vrsqrt.pop %v485
        %v529 = vmul.f32 %v528, %v485
        %v530 = vmul.f32 %v529, %v528
        %v531 = vmul.f32 0.5, %v530
        %v532 = vsub.f32 1.5, %v531
        %v533 = vmul.f32 %v528, %v532
        %vm534 = vweird.f32 %v485
        %vm535 = vweird.f32 %v528
        %vm536 = vmor %vm534, %vm535
        %v537 = vsel %vm536, %v528, %v533
        %v538 = vrsqrt.pop %v486
        %v539 = vmul.f32 %v538, %v486
        %v540 = vmul.f32 %v539, %v538
        %v541 = vmul.f32 0.5, %v540
        %v542 = vsub.f32 1.5, %v541
        %v543 = vmul.f32 %v538, %v542
        %vm544 = vweird.f32 %v486
        %vm545 = vweird.f32 %v538
        %vm546 = vmor %vm544, %vm545
        %v547 = vsel %vm546, %v538, %v543
        %v548 = vrsqrt.pop %v487
        %v549 = vmul.f32 %v548, %v487
        %v550 = vmul.f32 %v549, %v548
        %v551 = vmul.f32 0.5, %v550
        %v552 = vsub.f32 1.5, %v551
        %v553 = vmul.f32 %v548, %v552
        %vm554 = vweird.f32 %v487
        %vm555 = vweird.f32 %v548
        %vm556 = vmor %vm554, %vm555
        %v557 = vsel %vm556, %v548, %v553
        %v558 = vrsqrt.pop %v488
        %v559 = vmul.f32 %v558, %v488
        %v560 = vmul.f32 %v559, %v558
        %v561 = vmul.f32 0.5, %v560
        %v562 = vsub.f32 1.5, %v561
        %v563 = vmul.f32 %v558, %v562
        %vm564 = vweird.f32 %v488
        %vm565 = vweird.f32 %v558
        %vm566 = vmor %vm564, %vm565
        %v567 = vsel %vm566, %v558, %v563
        %v568 = vrsqrt.pop %v489
        %v569 = vmul.f32 %v568, %v489
        %v570 = vmul.f32 %v569, %v568
        %v571 = vmul.f32 0.5, %v570
        %v572 = vsub.f32 1.5, %v571
        %v573 = vmul.f32 %v568, %v572
        %vm574 = vweird.f32 %v489
        %vm575 = vweird.f32 %v568
        %vm576 = vmor %vm574, %vm575
        %v577 = vsel %vm576, %v568, %v573
        %v578 = vrsqrt.pop %v490
        %v579 = vmul.f32 %v578, %v490
        %v580 = vmul.f32 %v579, %v578
        %v581 = vmul.f32 0.5, %v580
        %v582 = vsub.f32 1.5, %v581
        %v583 = vmul.f32 %v578, %v582
        %vm584 = vweird.f32 %v490
        %vm585 = vweird.f32 %v578
        %vm586 = vmor %vm584, %vm585
        %v587 = vsel %vm586, %v578, %v583
        %v588 = vrsqrt.pop %v491
        %v589 = vmul.f32 %v588, %v491
        %v590 = vmul.f32 %v589, %v588
        %v591 = vmul.f32 0.5, %v590
        %v592 = vsub.f32 1.5, %v591
        %v593 = vmul.f32 %v588, %v592
        %vm594 = vweird.f32 %v491
        %vm595 = vweird.f32 %v588
        %vm596 = vmor %vm594, %vm595
        %v597 = vsel %vm596, %v588, %v593
        %v598 = vrsqrt.pop %v492
        %v599 = vmul.f32 %v598, %v492
        %v600 = vmul.f32 %v599, %v598
        %v601 = vmul.f32 0.5, %v600
        %v602 = vsub.f32 1.5, %v601
        %v603 = vmul.f32 %v598, %v602
        %vm604 = vweird.f32 %v492
        %vm605 = vweird.f32 %v598
        %vm606 = vmor %vm604, %vm605
        %v607 = vsel %vm606, %v598, %v603
        %v608 = vrsqrt.pop %v493
        %v609 = vmul.f32 %v608, %v493
        %v610 = vmul.f32 %v609, %v608
        %v611 = vmul.f32 0.5, %v610
        %v612 = vsub.f32 1.5, %v611
        %v613 = vmul.f32 %v608, %v612
        %vm614 = vweird.f32 %v493
        %vm615 = vweird.f32 %v608
        %vm616 = vmor %vm614, %vm615
        %v617 = vsel %vm616, %v608, %v613
        %v618 = vrsqrt.pop %v494
        %v619 = vmul.f32 %v618, %v494
        %v620 = vmul.f32 %v619, %v618
        %v621 = vmul.f32 0.5, %v620
        %v622 = vsub.f32 1.5, %v621
        %v623 = vmul.f32 %v618, %v622
        %vm624 = vweird.f32 %v494
        %vm625 = vweird.f32 %v618
        %vm626 = vmor %vm624, %vm625
        %v627 = vsel %vm626, %v618, %v623
        %v628 = vrsqrt.pop %v495
        %v629 = vmul.f32 %v628, %v495
        %v630 = vmul.f32 %v629, %v628
        %v631 = vmul.f32 0.5, %v630
        %v632 = vsub.f32 1.5, %v631
        %v633 = vmul.f32 %v628, %v632
        %vm634 = vweird.f32 %v495
        %vm635 = vweird.f32 %v628
        %vm636 = vmor %vm634, %vm635
        %v637 = vsel %vm636, %v628, %v633
        %v638 = vrsqrt.pop %v496
        %v639 = vmul.f32 %v638, %v496
        %v640 = vmul.f32 %v639, %v638
        %v641 = vmul.f32 0.5, %v640
        %v642 = vsub.f32 1.5, %v641
        %v643 = vmul.f32 %v638, %v642
        %vm644 = vweird.f32 %v496
        %vm645 = vweird.f32 %v638
        %vm646 = vmor %vm644, %vm645
        %v647 = vsel %vm646, %v638, %v643
        %v648 = vrsqrt.pop %v497
        %v649 = vmul.f32 %v648, %v497
        %v650 = vmul.f32 %v649, %v648
        %v651 = vmul.f32 0.5, %v650
        %v652 = vsub.f32 1.5, %v651
        %v653 = vmul.f32 %v648, %v652
        %vm654 = vweird.f32 %v497
        %vm655 = vweird.f32 %v648
        %vm656 = vmor %vm654, %vm655
        %v657 = vsel %vm656, %v648, %v653
        %v658 = vmul.f32 %v346, %v507
        %v659 = vmul.f32 %v348, %v517
        %v660 = vmul.f32 %v351, %v527
        %v661 = vmul.f32 %v353, %v537
        %v662 = vmul.f32 %v356, %v547
        %v663 = vmul.f32 %v358, %v557
        %v664 = vmul.f32 %v361, %v567
        %v665 = vmul.f32 %v363, %v577
        %v666 = vmul.f32 %v366, %v587
        %v667 = vmul.f32 %v368, %v597
        %v668 = vmul.f32 %v371, %v607
        %v669 = vmul.f32 %v373, %v617
        %v670 = vmul.f32 %v376, %v627
        %v671 = vmul.f32 %v378, %v637
        %v672 = vmul.f32 %v381, %v647
        %v673 = vmul.f32 %v383, %v657
        %v674 = vlaneseq
        %v675 = vshrl.u32 %v674, 7
        %v676 = vadd.s32 %v675, 8
        %v677 = vadd.s32 %v675, 16
        %v678 = vadd.s32 %v675, 24
        %v679 = vadd.s32 %v675, 32
        %v680 = vadd.s32 %v675, 40
        %v681 = vadd.s32 %v675, 48
        %v682 = vadd.s32 %v675, 56
        %v683 = vadd.s32 %v675, 64
        %v684 = vadd.s32 %v675, 72
        %v685 = vadd.s32 %v675, 80
        %v686 = vadd.s32 %v675, 88
        %v687 = vadd.s32 %v675, 96
        %v688 = vadd.s32 %v675, 104
        %v689 = vadd.s32 %v675, 112
        %v690 = vadd.s32 %v675, 120
        %vm691 = vcmp.lt.s32.totalorder %v675, 96
        %vm692 = vcmp.lt.s32.totalorder %v676, 96
        %vm693 = vcmp.lt.s32.totalorder %v677, 96
        %vm694 = vcmp.lt.s32.totalorder %v678, 96
        %vm695 = vcmp.lt.s32.totalorder %v679, 96
        %vm696 = vcmp.lt.s32.totalorder %v680, 96
        %vm697 = vcmp.lt.s32.totalorder %v681, 96
        %vm698 = vcmp.lt.s32.totalorder %v682, 96
        %vm699 = vcmp.lt.s32.totalorder %v683, 96
        %vm700 = vcmp.lt.s32.totalorder %v684, 96
        %vm701 = vcmp.lt.s32.totalorder %v685, 96
        %vm702 = vcmp.lt.s32.totalorder %v686, 96
        %vm703 = vcmp.lt.s32.totalorder %v687, 96
        %vm704 = vcmp.lt.s32.totalorder %v688, 96
        %vm705 = vcmp.lt.s32.totalorder %v689, 96
        %vm706 = vcmp.lt.s32.totalorder %v690, 96
        %v707 = vsel %vm691, %v658, 0.0
        %v708 = vsel %vm692, %v659, 0.0
        %v709 = vsel %vm693, %v660, 0.0
        %v710 = vsel %vm694, %v661, 0.0
        %v711 = vsel %vm695, %v662, 0.0
        %v712 = vsel %vm696, %v663, 0.0
        %v713 = vsel %vm697, %v664, 0.0
        %v714 = vsel %vm698, %v665, 0.0
        %v715 = vsel %vm699, %v666, 0.0
        %v716 = vsel %vm700, %v667, 0.0
        %v717 = vsel %vm701, %v668, 0.0
        %v718 = vsel %vm702, %v669, 0.0
        %v719 = vsel %vm703, %v670, 0.0
        %v720 = vsel %vm704, %v671, 0.0
        %v721 = vsel %vm705, %v672, 0.0
        %v722 = vsel %vm706, %v673, 0.0
        %v723 = vpack.c.bf16 %v707, %v707
        %v724 = vpack.c.bf16 %v708, %v708
        %v725 = vpack.c.bf16 %v709, %v709
        %v726 = vpack.c.bf16 %v710, %v710
        %v727 = vpack.c.bf16 %v711, %v711
        %v728 = vpack.c.bf16 %v712, %v712
        %v729 = vpack.c.bf16 %v713, %v713
        %v730 = vpack.c.bf16 %v714, %v714
        %v731 = vpack.c.bf16 %v715, %v715
        %v732 = vpack.c.bf16 %v716, %v716
        %v733 = vpack.c.bf16 %v717, %v717
        %v734 = vpack.c.bf16 %v718, %v718
        %v735 = vpack.c.bf16 %v719, %v719
        %v736 = vpack.c.bf16 %v720, %v720
        %v737 = vpack.c.bf16 %v721, %v721
        %v738 = vpack.c.bf16 %v722, %v722
        %739 = vst [vmem:[#allocation2] sm:$0xf] %v723
        %740 = vst [vmem:[#allocation2 + $0x4] sm:$0xf] %v724
        %741 = vst [vmem:[#allocation2 + $0x8] sm:$0xf] %v725
        %742 = vst [vmem:[#allocation2 + $0xc] sm:$0xf] %v726
        %743 = vst [vmem:[#allocation2 + $0x10] sm:$0xf] %v727
        %744 = vst [vmem:[#allocation2 + $0x14] sm:$0xf] %v728
        %745 = vst [vmem:[#allocation2 + $0x18] sm:$0xf] %v729
        %746 = vst [vmem:[#allocation2 + $0x1c] sm:$0xf] %v730
        %747 = vst [vmem:[#allocation2 + $0x20] sm:$0xf] %v731
        %748 = vst [vmem:[#allocation2 + $0x24] sm:$0xf] %v732
        %749 = vst [vmem:[#allocation2 + $0x28] sm:$0xf] %v733
        %750 = vst [vmem:[#allocation2 + $0x2c] sm:$0xf] %v734
        %751 = vst [vmem:[#allocation2 + $0x30] sm:$0xf] %v735
        %752 = vst [vmem:[#allocation2 + $0x34] sm:$0xf] %v736
        %753 = vst [vmem:[#allocation2 + $0x38] sm:$0xf] %v737
        %754 = vst [vmem:[#allocation2 + $0x3c] sm:$0xf] %v738
        %v755 = vpack.c.bf16 %v395, %v395
        %v756 = vpack.c.bf16 %v397, %v397
        %v757 = vpack.c.bf16 %v400, %v400
        %v758 = vpack.c.bf16 %v402, %v402
        %v759 = vpack.c.bf16 %v405, %v405
        %v760 = vpack.c.bf16 %v407, %v407
        %v761 = vpack.c.bf16 %v410, %v410
        %v762 = vpack.c.bf16 %v412, %v412
        %v763 = vpack.c.bf16 %v415, %v415
        %v764 = vpack.c.bf16 %v417, %v417
        %v765 = vpack.c.bf16 %v420, %v420
        %v766 = vpack.c.bf16 %v422, %v422
        %v767 = vpack.c.bf16 %v425, %v425
        %v768 = vpack.c.bf16 %v427, %v427
        %v769 = vpack.c.bf16 %v430, %v430
        %v770 = vpack.c.bf16 %v432, %v432
        %771 = vst [vmem:[#allocation3] sm:$0xf] %v755
        %772 = vst [vmem:[#allocation3 + $0x4] sm:$0xf] %v756
        %773 = vst [vmem:[#allocation3 + $0x8] sm:$0xf] %v757
        %774 = vst [vmem:[#allocation3 + $0xc] sm:$0xf] %v758
        %775 = vst [vmem:[#allocation3 + $0x10] sm:$0xf] %v759
        %776 = vst [vmem:[#allocation3 + $0x14] sm:$0xf] %v760
        %777 = vst [vmem:[#allocation3 + $0x18] sm:$0xf] %v761
        %778 = vst [vmem:[#allocation3 + $0x1c] sm:$0xf] %v762
        %779 = vst [vmem:[#allocation3 + $0x20] sm:$0xf] %v763
        %780 = vst [vmem:[#allocation3 + $0x24] sm:$0xf] %v764
        %781 = vst [vmem:[#allocation3 + $0x28] sm:$0xf] %v765
        %782 = vst [vmem:[#allocation3 + $0x2c] sm:$0xf] %v766
        %783 = vst [vmem:[#allocation3 + $0x30] sm:$0xf] %v767
        %784 = vst [vmem:[#allocation3 + $0x34] sm:$0xf] %v768
        %785 = vst [vmem:[#allocation3 + $0x38] sm:$0xf] %v769
        %786 = vst [vmem:[#allocation3 + $0x3c] sm:$0xf] %v770
      $region44: #{attention_block.1} parent=39 // pred_fallthru
        _
      %s787 = smul.u32 %s16, 64
      %s788 = scalar_lea.vmem %s0, %s787
      %v789 = vld [vmem:[%s788] sm:$0xff]
      %v790 = vld [vmem:[%s788 + $0x8] sm:$0xff]
      %v791 = vld [vmem:[%s788 + $0x10] sm:$0xff]
      %v792 = vld [vmem:[%s788 + $0x18] sm:$0xff]
      %v793 = vld [vmem:[%s788 + $0x20] sm:$0xff]
      %v794 = vld [vmem:[%s788 + $0x28] sm:$0xff]
      %v795 = vld [vmem:[%s788 + $0x30] sm:$0xff]
      %v796 = vld [vmem:[%s788 + $0x38] sm:$0xff]
      %v797 = vpack.c.bf16 %v790, %v789
      %v798 = vpack.c.bf16 %v792, %v791
      %v799 = vpack.c.bf16 %v794, %v793
      %v800 = vpack.c.bf16 %v796, %v795
      %v801 = vld [vmem:[%s1] sm:$0xf]
      %v802 = vld [vmem:[%s1 + $0x4] sm:$0xf]
      %v803 = vld [vmem:[%s1 + $0x8] sm:$0xf]
      %v804 = vld [vmem:[%s1 + $0xc] sm:$0xf]
      %v805 = vld [vmem:[%s1 + $0x10] sm:$0xf]
      %v806 = vld [vmem:[%s1 + $0x14] sm:$0xf]
      %v807 = vld [vmem:[%s1 + $0x18] sm:$0xf]
      %v808 = vld [vmem:[%s1 + $0x1c] sm:$0xf]
      %v809 = vld [vmem:[%s1 + $0x20] sm:$0xf]
      %v810 = vld [vmem:[%s1 + $0x24] sm:$0xf]
      %v811 = vld [vmem:[%s1 + $0x28] sm:$0xf]
      %v812 = vld [vmem:[%s1 + $0x2c] sm:$0xf]
      %v813 = vld [vmem:[%s1 + $0x30] sm:$0xf]
      %v814 = vld [vmem:[%s1 + $0x34] sm:$0xf]
      %v815 = vld [vmem:[%s1 + $0x38] sm:$0xf]
      %v816 = vld [vmem:[%s1 + $0x3c] sm:$0xf]
      %v817 = vld [vmem:[%s2] sm:$0x1]
      %v819 = vperm.slane %v817, 0
      %v837 = vunpack.c.l.b16 %v801
      %v838 = vunpack.c.l.b16 %v802
      %v839 = vunpack.c.l.b16 %v803
      %v840 = vunpack.c.l.b16 %v804
      %v841 = vunpack.c.l.b16 %v805
      %v842 = vunpack.c.l.b16 %v806
      %v843 = vunpack.c.l.b16 %v807
      %v844 = vunpack.c.l.b16 %v808
      %v845 = vunpack.c.l.b16 %v809
      %v846 = vunpack.c.l.b16 %v810
      %v847 = vunpack.c.l.b16 %v811
      %v848 = vunpack.c.l.b16 %v812
      %v849 = vunpack.c.l.b16 %v813
      %v850 = vunpack.c.l.b16 %v814
      %v851 = vunpack.c.l.b16 %v815
      %v852 = vunpack.c.l.b16 %v816
      %v853 = vpack.c.b16 %v838, %v837
      %v854 = vpack.c.b16 %v840, %v839
      %v855 = vpack.c.b16 %v842, %v841
      %v856 = vpack.c.b16 %v844, %v843
      %v857 = vpack.c.b16 %v846, %v845
      %v858 = vpack.c.b16 %v848, %v847
      %v859 = vpack.c.b16 %v850, %v849
      %v860 = vpack.c.b16 %v852, %v851
      %869 = vmatpush.bf16.msra.mxu0 %v860
      %870 = vmatpush.bf16.msra.mxu0 %v859
      %871 = vmatpush.bf16.msra.mxu0 %v858
      %872 = vmatpush.bf16.msra.mxu0 %v857
      %873 = vmatpush.bf16.msra.mxu0 %v856
      %874 = vmatpush.bf16.msra.mxu0 %v855
      %875 = vmatpush.bf16.msra.mxu0 %v854
      %876 = vmatpush.bf16.msra.mxu0 %v853
      %877 = vmatmul.bf16.gmra.mxu0 %v797
      %v878 = vpop.f32.mrf.mxu0
      %v879 = vadd.f32 %v819, %v878
      %v880 = vpop.f32.mrf.mxu0
      %v881 = vadd.f32 %v819, %v880
      %882 = vmatmul.bf16.gmra.mxu0 %v798
      %v883 = vpop.f32.mrf.mxu0
      %v884 = vadd.f32 %v819, %v883
      %v885 = vpop.f32.mrf.mxu0
      %v886 = vadd.f32 %v819, %v885
      %887 = vmatmul.bf16.gmra.mxu0 %v799
      %v888 = vpop.f32.mrf.mxu0
      %v889 = vadd.f32 %v819, %v888
      %v890 = vpop.f32.mrf.mxu0
      %v891 = vadd.f32 %v819, %v890
      %892 = vmatmul.bf16.gmra.mxu0 %v800
      %v893 = vpop.f32.mrf.mxu0
      %v894 = vadd.f32 %v819, %v893
      %v895 = vpop.f32.mrf.mxu0
      %v896 = vadd.f32 %v819, %v895
      %897 = vdwg.mxu0
      %v898 = vmul.f32 %v879, %v879
      %v899 = vmul.f32 %v881, %v881
      %v900 = vmul.f32 %v884, %v884
      %v901 = vmul.f32 %v886, %v886
      %v902 = vmul.f32 %v889, %v889
      %v903 = vmul.f32 %v891, %v891
      %v904 = vmul.f32 %v894, %v894
      %v905 = vmul.f32 %v896, %v896
      %906 = vadd.xlane.f32.xlu0 %v898
      %v907 = vpop.xlane.xlu0 %906
      %908 = vadd.xlane.f32.xlu0 %v899
      %v909 = vpop.xlane.xlu0 %908
      %910 = vadd.xlane.f32.xlu0 %v900
      %v911 = vpop.xlane.xlu0 %910
      %912 = vadd.xlane.f32.xlu0 %v901
      %v913 = vpop.xlane.xlu0 %912
      %914 = vadd.xlane.f32.xlu0 %v902
      %v915 = vpop.xlane.xlu0 %914
      %916 = vadd.xlane.f32.xlu0 %v903
      %v917 = vpop.xlane.xlu0 %916
      %918 = vadd.xlane.f32.xlu0 %v904
      %v919 = vpop.xlane.xlu0 %918
      %920 = vadd.xlane.f32.xlu0 %v905
      %v921 = vpop.xlane.xlu0 %920
      %v922 = vmax.f32 %v907, 1e-24
      %v923 = vmax.f32 %v909, 1e-24
      %v924 = vmax.f32 %v911, 1e-24
      %v925 = vmax.f32 %v913, 1e-24
      %v926 = vmax.f32 %v915, 1e-24
      %v927 = vmax.f32 %v917, 1e-24
      %v928 = vmax.f32 %v919, 1e-24
      %v929 = vmax.f32 %v921, 1e-24
      %v930 = vrsqrt.pop %v922
      %v931 = vmul.f32 %v930, %v922
      %v932 = vmul.f32 %v931, %v930
      %v933 = vmul.f32 0.5, %v932
      %v934 = vsub.f32 1.5, %v933
      %v935 = vmul.f32 %v930, %v934
      %vm936 = vweird.f32 %v922
      %vm937 = vweird.f32 %v930
      %vm938 = vmor %vm936, %vm937
      %v939 = vsel %vm938, %v930, %v935
      %v940 = vrsqrt.pop %v923
      %v941 = vmul.f32 %v940, %v923
      %v942 = vmul.f32 %v941, %v940
      %v943 = vmul.f32 0.5, %v942
      %v944 = vsub.f32 1.5, %v943
      %v945 = vmul.f32 %v940, %v944
      %vm946 = vweird.f32 %v923
      %vm947 = vweird.f32 %v940
      %vm948 = vmor %vm946, %vm947
      %v949 = vsel %vm948, %v940, %v945
      %v950 = vrsqrt.pop %v924
      %v951 = vmul.f32 %v950, %v924
      %v952 = vmul.f32 %v951, %v950
      %v953 = vmul.f32 0.5, %v952
      %v954 = vsub.f32 1.5, %v953
      %v955 = vmul.f32 %v950, %v954
      %vm956 = vweird.f32 %v924
      %vm957 = vweird.f32 %v950
      %vm958 = vmor %vm956, %vm957
      %v959 = vsel %vm958, %v950, %v955
      %v960 = vrsqrt.pop %v925
      %v961 = vmul.f32 %v960, %v925
      %v962 = vmul.f32 %v961, %v960
      %v963 = vmul.f32 0.5, %v962
      %v964 = vsub.f32 1.5, %v963
      %v965 = vmul.f32 %v960, %v964
      %vm966 = vweird.f32 %v925
      %vm967 = vweird.f32 %v960
      %vm968 = vmor %vm966, %vm967
      %v969 = vsel %vm968, %v960, %v965
      %v970 = vrsqrt.pop %v926
      %v971 = vmul.f32 %v970, %v926
      %v972 = vmul.f32 %v971, %v970
      %v973 = vmul.f32 0.5, %v972
      %v974 = vsub.f32 1.5, %v973
      %v975 = vmul.f32 %v970, %v974
      %vm976 = vweird.f32 %v926
      %vm977 = vweird.f32 %v970
      %vm978 = vmor %vm976, %vm977
      %v979 = vsel %vm978, %v970, %v975
      %v980 = vrsqrt.pop %v927
      %v981 = vmul.f32 %v980, %v927
      %v982 = vmul.f32 %v981, %v980
      %v983 = vmul.f32 0.5, %v982
      %v984 = vsub.f32 1.5, %v983
      %v985 = vmul.f32 %v980, %v984
      %vm986 = vweird.f32 %v927
      %vm987 = vweird.f32 %v980
      %vm988 = vmor %vm986, %vm987
      %v989 = vsel %vm988, %v980, %v985
      %v990 = vrsqrt.pop %v928
      %v991 = vmul.f32 %v990, %v928
      %v992 = vmul.f32 %v991, %v990
      %v993 = vmul.f32 0.5, %v992
      %v994 = vsub.f32 1.5, %v993
      %v995 = vmul.f32 %v990, %v994
      %vm996 = vweird.f32 %v928
      %vm997 = vweird.f32 %v990
      %vm998 = vmor %vm996, %vm997
      %v999 = vsel %vm998, %v990, %v995
      %v1000 = vrsqrt.pop %v929
      %v1001 = vmul.f32 %v1000, %v929
      %v1002 = vmul.f32 %v1001, %v1000
      %v1003 = vmul.f32 0.5, %v1002
      %v1004 = vsub.f32 1.5, %v1003
      %v1005 = vmul.f32 %v1000, %v1004
      %vm1006 = vweird.f32 %v929
      %vm1007 = vweird.f32 %v1000
      %vm1008 = vmor %vm1006, %vm1007
      %v1009 = vsel %vm1008, %v1000, %v1005
      %v1010 = vmul.f32 %v879, %v939
      %v1011 = vmul.f32 %v881, %v949
      %v1012 = vmul.f32 %v884, %v959
      %v1013 = vmul.f32 %v886, %v969
      %v1014 = vmul.f32 %v889, %v979
      %v1015 = vmul.f32 %v891, %v989
      %v1016 = vmul.f32 %v894, %v999
      %v1017 = vmul.f32 %v896, %v1009
      %v1018 = vpack.c.bf16 %v1011, %v1010
      %v1019 = vpack.c.bf16 %v1013, %v1012
      %v1020 = vpack.c.bf16 %v1015, %v1014
      %v1021 = vpack.c.bf16 %v1017, %v1016
      %v1022 = vld [vmem:[#allocation2] sm:$0xf]
      %v1023 = vld [vmem:[#allocation2 + $0x4] sm:$0xf]
      %v1024 = vld [vmem:[#allocation2 + $0x8] sm:$0xf]
      %v1025 = vld [vmem:[#allocation2 + $0xc] sm:$0xf]
      %v1026 = vld [vmem:[#allocation2 + $0x10] sm:$0xf]
      %v1027 = vld [vmem:[#allocation2 + $0x14] sm:$0xf]
      %v1028 = vld [vmem:[#allocation2 + $0x18] sm:$0xf]
      %v1029 = vld [vmem:[#allocation2 + $0x1c] sm:$0xf]
      %v1030 = vld [vmem:[#allocation2 + $0x20] sm:$0xf]
      %v1031 = vld [vmem:[#allocation2 + $0x24] sm:$0xf]
      %v1032 = vld [vmem:[#allocation2 + $0x28] sm:$0xf]
      %v1033 = vld [vmem:[#allocation2 + $0x2c] sm:$0xf]
      %v1034 = vld [vmem:[#allocation2 + $0x30] sm:$0xf]
      %v1035 = vld [vmem:[#allocation2 + $0x34] sm:$0xf]
      %v1036 = vld [vmem:[#allocation2 + $0x38] sm:$0xf]
      %v1037 = vld [vmem:[#allocation2 + $0x3c] sm:$0xf]
      %v1054 = vunpack.c.l.b16 %v1022
      %v1055 = vunpack.c.l.b16 %v1023
      %v1056 = vunpack.c.l.b16 %v1024
      %v1057 = vunpack.c.l.b16 %v1025
      %v1058 = vunpack.c.l.b16 %v1026
      %v1059 = vunpack.c.l.b16 %v1027
      %v1060 = vunpack.c.l.b16 %v1028
      %v1061 = vunpack.c.l.b16 %v1029
      %v1062 = vunpack.c.l.b16 %v1030
      %v1063 = vunpack.c.l.b16 %v1031
      %v1064 = vunpack.c.l.b16 %v1032
      %v1065 = vunpack.c.l.b16 %v1033
      %v1066 = vunpack.c.l.b16 %v1034
      %v1067 = vunpack.c.l.b16 %v1035
      %v1068 = vunpack.c.l.b16 %v1036
      %v1069 = vunpack.c.l.b16 %v1037
      %v1070 = vpack.c.b16 %v1055, %v1054
      %v1071 = vpack.c.b16 %v1057, %v1056
      %v1072 = vpack.c.b16 %v1059, %v1058
      %v1073 = vpack.c.b16 %v1061, %v1060
      %v1074 = vpack.c.b16 %v1063, %v1062
      %v1075 = vpack.c.b16 %v1065, %v1064
      %v1076 = vpack.c.b16 %v1067, %v1066
      %v1077 = vpack.c.b16 %v1069, %v1068
      %1086 = vmatpush.bf16.xpose.msra.mxu0 %v1077
      %1087 = vmatpush.bf16.xpose.msra.mxu0 %v1076
      %1088 = vmatpush.bf16.xpose.msra.mxu0 %v1075
      %1089 = vmatpush.bf16.xpose.msra.mxu0 %v1074
      %1090 = vmatpush.bf16.xpose.msra.mxu0 %v1073
      %1091 = vmatpush.bf16.xpose.msra.mxu0 %v1072
      %1092 = vmatpush.bf16.xpose.msra.mxu0 %v1071
      %1093 = vmatpush.bf16.xpose.msra.mxu0 %v1070
      %1094 = vmatmul.bf16.gmra.mxu0 %v1018
      %v1095 = vpop.f32.mrf.mxu0
      %v1096 = vadd.f32 0.0, %v1095
      %v1097 = vpop.f32.mrf.mxu0
      %v1098 = vadd.f32 0.0, %v1097
      %1099 = vmatmul.bf16.gmra.mxu0 %v1019
      %v1100 = vpop.f32.mrf.mxu0
      %v1101 = vadd.f32 0.0, %v1100
      %v1102 = vpop.f32.mrf.mxu0
      %v1103 = vadd.f32 0.0, %v1102
      %1104 = vmatmul.bf16.gmra.mxu0 %v1020
      %v1105 = vpop.f32.mrf.mxu0
      %v1106 = vadd.f32 0.0, %v1105
      %v1107 = vpop.f32.mrf.mxu0
      %v1108 = vadd.f32 0.0, %v1107
      %1109 = vmatmul.bf16.gmra.mxu0 %v1021
      %v1110 = vpop.f32.mrf.mxu0
      %v1111 = vadd.f32 0.0, %v1110
      %v1112 = vpop.f32.mrf.mxu0
      %v1113 = vadd.f32 0.0, %v1112
      %1114 = vdwg.mxu0
      %v1115 = vmax.f32 %v1096, 0.0
      %v1116 = vmax.f32 %v1098, 0.0
      %v1117 = vmax.f32 %v1101, 0.0
      %v1118 = vmax.f32 %v1103, 0.0
      %v1119 = vmax.f32 %v1106, 0.0
      %v1120 = vmax.f32 %v1108, 0.0
      %v1121 = vmax.f32 %v1111, 0.0
      %v1122 = vmax.f32 %v1113, 0.0
      %v1123 = vlaneseq
      %v1124 = vshrl.u32 %v1123, 7
      %v1125 = vadd.s32 %v1124, 8
      %v1126 = vadd.s32 %v1124, 16
      %v1127 = vadd.s32 %v1124, 24
      %v1128 = vadd.s32 %v1124, 32
      %v1129 = vadd.s32 %v1124, 40
      %v1130 = vadd.s32 %v1124, 48
      %v1131 = vadd.s32 %v1124, 56
      %v1132 = vstv %s787
      %v1133 = vadd.s32 %v1124, %v1132
      %v1134 = vadd.s32 %v1125, %v1132
      %v1135 = vadd.s32 %v1126, %v1132
      %v1136 = vadd.s32 %v1127, %v1132
      %v1137 = vadd.s32 %v1128, %v1132
      %v1138 = vadd.s32 %v1129, %v1132
      %v1139 = vadd.s32 %v1130, %v1132
      %v1140 = vadd.s32 %v1131, %v1132
      %v1141 = vlaneseq
      %v1142 = vand.u32 %v1141, 127
      %vm1143 = vcmp.eq.s32.totalorder %v1142, %v1133
      %vm1144 = vcmp.eq.s32.totalorder %v1142, %v1134
      %vm1145 = vcmp.eq.s32.totalorder %v1142, %v1135
      %vm1146 = vcmp.eq.s32.totalorder %v1142, %v1136
      %vm1147 = vcmp.eq.s32.totalorder %v1142, %v1137
      %vm1148 = vcmp.eq.s32.totalorder %v1142, %v1138
      %vm1149 = vcmp.eq.s32.totalorder %v1142, %v1139
      %vm1150 = vcmp.eq.s32.totalorder %v1142, %v1140
      %v1151 = vsel %vm1143, 0.0, %v1115
      %v1152 = vsel %vm1144, 0.0, %v1116
      %v1153 = vsel %vm1145, 0.0, %v1117
      %v1154 = vsel %vm1146, 0.0, %v1118
      %v1155 = vsel %vm1147, 0.0, %v1119
      %v1156 = vsel %vm1148, 0.0, %v1120
      %v1157 = vsel %vm1149, 0.0, %v1121
      %v1158 = vsel %vm1150, 0.0, %v1122
      %1159 = vadd.xlane.f32.xlu0 %v1151
      %v1160 = vpop.xlane.xlu0 %1159
      %1161 = vadd.xlane.f32.xlu0 %v1152
      %v1162 = vpop.xlane.xlu0 %1161
      %1163 = vadd.xlane.f32.xlu0 %v1153
      %v1164 = vpop.xlane.xlu0 %1163
      %1165 = vadd.xlane.f32.xlu0 %v1154
      %v1166 = vpop.xlane.xlu0 %1165
      %1167 = vadd.xlane.f32.xlu0 %v1155
      %v1168 = vpop.xlane.xlu0 %1167
      %1169 = vadd.xlane.f32.xlu0 %v1156
      %v1170 = vpop.xlane.xlu0 %1169
      %1171 = vadd.xlane.f32.xlu0 %v1157
      %v1172 = vpop.xlane.xlu0 %1171
      %1173 = vadd.xlane.f32.xlu0 %v1158
      %v1174 = vpop.xlane.xlu0 %1173
      %v1175 = vmax.f32 %v1160, 1e-12
      %v1176 = vmax.f32 %v1162, 1e-12
      %v1177 = vmax.f32 %v1164, 1e-12
      %v1178 = vmax.f32 %v1166, 1e-12
      %v1179 = vmax.f32 %v1168, 1e-12
      %v1180 = vmax.f32 %v1170, 1e-12
      %v1181 = vmax.f32 %v1172, 1e-12
      %v1182 = vmax.f32 %v1174, 1e-12
      %v1183 = vrcp.pop %v1175
      %v1184 = vrcp.pop %v1176
      %v1185 = vrcp.pop %v1177
      %v1186 = vrcp.pop %v1178
      %v1187 = vrcp.pop %v1179
      %v1188 = vrcp.pop %v1180
      %v1189 = vrcp.pop %v1181
      %v1190 = vrcp.pop %v1182
      %v1191 = vmul.f32 %v1151, %v1183
      %v1192 = vmul.f32 %v1152, %v1184
      %v1193 = vmul.f32 %v1153, %v1185
      %v1194 = vmul.f32 %v1154, %v1186
      %v1195 = vmul.f32 %v1155, %v1187
      %v1196 = vmul.f32 %v1156, %v1188
      %v1197 = vmul.f32 %v1157, %v1189
      %v1198 = vmul.f32 %v1158, %v1190
      %v1199 = vpack.c.bf16 %v1192, %v1191
      %v1200 = vpack.c.bf16 %v1194, %v1193
      %v1201 = vpack.c.bf16 %v1196, %v1195
      %v1202 = vpack.c.bf16 %v1198, %v1197
      %v1203 = vld [vmem:[#allocation3] sm:$0xf]
      %v1204 = vld [vmem:[#allocation3 + $0x4] sm:$0xf]
      %v1205 = vld [vmem:[#allocation3 + $0x8] sm:$0xf]
      %v1206 = vld [vmem:[#allocation3 + $0xc] sm:$0xf]
      %v1207 = vld [vmem:[#allocation3 + $0x10] sm:$0xf]
      %v1208 = vld [vmem:[#allocation3 + $0x14] sm:$0xf]
      %v1209 = vld [vmem:[#allocation3 + $0x18] sm:$0xf]
      %v1210 = vld [vmem:[#allocation3 + $0x1c] sm:$0xf]
      %v1211 = vld [vmem:[#allocation3 + $0x20] sm:$0xf]
      %v1212 = vld [vmem:[#allocation3 + $0x24] sm:$0xf]
      %v1213 = vld [vmem:[#allocation3 + $0x28] sm:$0xf]
      %v1214 = vld [vmem:[#allocation3 + $0x2c] sm:$0xf]
      %v1215 = vld [vmem:[#allocation3 + $0x30] sm:$0xf]
      %v1216 = vld [vmem:[#allocation3 + $0x34] sm:$0xf]
      %v1217 = vld [vmem:[#allocation3 + $0x38] sm:$0xf]
      %v1218 = vld [vmem:[#allocation3 + $0x3c] sm:$0xf]
      %v1235 = vunpack.c.l.b16 %v1203
      %v1236 = vunpack.c.l.b16 %v1204
      %v1237 = vunpack.c.l.b16 %v1205
      %v1238 = vunpack.c.l.b16 %v1206
      %v1239 = vunpack.c.l.b16 %v1207
      %v1240 = vunpack.c.l.b16 %v1208
      %v1241 = vunpack.c.l.b16 %v1209
      %v1242 = vunpack.c.l.b16 %v1210
      %v1243 = vunpack.c.l.b16 %v1211
      %v1244 = vunpack.c.l.b16 %v1212
      %v1245 = vunpack.c.l.b16 %v1213
      %v1246 = vunpack.c.l.b16 %v1214
      %v1247 = vunpack.c.l.b16 %v1215
      %v1248 = vunpack.c.l.b16 %v1216
      %v1249 = vunpack.c.l.b16 %v1217
      %v1250 = vunpack.c.l.b16 %v1218
      %v1251 = vpack.c.b16 %v1236, %v1235
      %v1252 = vpack.c.b16 %v1238, %v1237
      %v1253 = vpack.c.b16 %v1240, %v1239
      %v1254 = vpack.c.b16 %v1242, %v1241
      %v1255 = vpack.c.b16 %v1244, %v1243
      %v1256 = vpack.c.b16 %v1246, %v1245
      %v1257 = vpack.c.b16 %v1248, %v1247
      %v1258 = vpack.c.b16 %v1250, %v1249
      %1267 = vmatpush.bf16.msra.mxu0 %v1258
      %1268 = vmatpush.bf16.msra.mxu0 %v1257
      %1269 = vmatpush.bf16.msra.mxu0 %v1256
      %1270 = vmatpush.bf16.msra.mxu0 %v1255
      %1271 = vmatpush.bf16.msra.mxu0 %v1254
      %1272 = vmatpush.bf16.msra.mxu0 %v1253
      %1273 = vmatpush.bf16.msra.mxu0 %v1252
      %1274 = vmatpush.bf16.msra.mxu0 %v1251
      %1275 = vmatmul.bf16.gmra.mxu0 %v1199
      %v1276 = vpop.f32.mrf.mxu0
      %v1277 = vadd.f32 %v789, %v1276
      %v1278 = vpop.f32.mrf.mxu0
      %v1279 = vadd.f32 %v790, %v1278
      %1280 = vmatmul.bf16.gmra.mxu0 %v1200
      %v1281 = vpop.f32.mrf.mxu0
      %v1282 = vadd.f32 %v791, %v1281
      %v1283 = vpop.f32.mrf.mxu0
      %v1284 = vadd.f32 %v792, %v1283
      %1285 = vmatmul.bf16.gmra.mxu0 %v1201
      %v1286 = vpop.f32.mrf.mxu0
      %v1287 = vadd.f32 %v793, %v1286
      %v1288 = vpop.f32.mrf.mxu0
      %v1289 = vadd.f32 %v794, %v1288
      %1290 = vmatmul.bf16.gmra.mxu0 %v1202
      %v1291 = vpop.f32.mrf.mxu0
      %v1292 = vadd.f32 %v795, %v1291
      %v1293 = vpop.f32.mrf.mxu0
      %v1294 = vadd.f32 %v796, %v1293
      %1295 = vdwg.mxu0
      %1296 = vst [vmem:[%s204] sm:$0xff] %v1277
      %1297 = vst [vmem:[%s204 + $0x8] sm:$0xff] %v1279
      %1298 = vst [vmem:[%s204 + $0x10] sm:$0xff] %v1282
      %1299 = vst [vmem:[%s204 + $0x18] sm:$0xff] %v1284
      %1300 = vst [vmem:[%s204 + $0x20] sm:$0xff] %v1287
      %1301 = vst [vmem:[%s204 + $0x28] sm:$0xff] %v1289
      %1302 = vst [vmem:[%s204 + $0x30] sm:$0xff] %v1292
      %1303 = vst [vmem:[%s204 + $0x38] sm:$0xff] %v1294
      %s1304 = smul.u32 8, %s16
      %p1305 = scmp.lt.s32.totalorder %s1304, 15
      %s1306 = scalar_select %p1305, %s1304, 15
      %s1307 = smul.addr %s1306, 8
      %s1308 = scalar_lea.vmem %s5, %s1307
      // Predicated region
      $region45: #{attention_block.1} parent=39 // pred_check
        %p1309 = pneg %p139
      $region46: #{attention_block.1} parent=39 // pred_check_branch
        %1311 = sbr.rel (%p1309) target = $region48
      $region47: #{attention_block.1} parent=39 // pred_region
        %s1312 = smul.u32 8, %s16
      $region48: #{attention_block.1} parent=39 // pred_fallthru
        _
    $region40: #{attention_block.1} parent=5 // pred_fallthru
      _
    %p1313 = scmp.le.s32.totalorder 2, %s11
    // Predicated region
    $region49: #{attention_block.1} parent=5 // pred_check
      %p1314 = pneg %p1313
    $region50: #{attention_block.1} parent=5 // pred_check_branch
      %1316 = sbr.rel (%p1314) target = $region52
    $region51: #{attention_block.1} parent=5 // pred_region
      %s1317 = ssub.s32 %s11, 2
      // Predicated region
      $region53: #{attention_block.1} parent=51 // pred_check
        %p1318 = pneg %p145
      $region54: #{attention_block.1} parent=51 // pred_check_branch
        %1320 = sbr.rel (%p1318) target = $region56
      $region55: #{attention_block.1} parent=51 // pred_region
        %s1321 = smul.u32 8, %s17
        %p1322 = scmp.lt.s32.totalorder %s1321, 15
        %s1323 = scalar_select %p1322, %s1321, 15
        %s1324 = smul.addr %s1323, 8
        %s1325 = scalar_lea.vmem %s5, %s1324
      $region56: #{attention_block.1} parent=51 // pred_fallthru
        _
    $region52: #{attention_block.1} parent=5 // pred_fallthru
      _
  $region6: #{attention_block.1} parent=0 // loop_footer
    %s15 = sadd.s32 1, %s11
  $region7: #{attention_block.1} parent=0 // loop_footer_branch
    %10 = sbr.rel target = $region3
  $region8: #{attention_block.1} parent=0 // loop_exit
    _

</llo_original>
